<compile_context>
chip_gen: v6e
topology: v6e:2x2x1
jax: 0.10.0
libtpu: 0.0.40
codegen_flags: <defaults>
</compile_context>

<pallas_src>
import functools

import jax
import jax.numpy as jnp
from jax.experimental import pallas as pl
from jax.experimental.pallas import tpu as pltpu

B, C, H, W = 2, 4, 16, 16
HW = H * W                 # 256
N = C * HW                 # 1024
LANE = 128                 # TPU lane width
ROWS = N // LANE           # 8 sublane rows per sample -> (B, 8, 128)
SEG_ROWS = HW // LANE      # 2 rows per channel (and per seg-output sample)

XI = 1e-3   # VATLoss defaults: xi=0.001, eps=1.0, ip=1
EPS = 1.0
IP = 1


def _log_sigmoid(z):
    # numerically stable log(sigmoid(z)); pure jnp so it works in-kernel and in the ref.
    return jnp.minimum(z, 0.0) - jnp.log1p(jnp.exp(-jnp.abs(z)))


def _psum(t):
    # per-sample full reduce of a (B', ROWS, LANE) tile -> (B', 1, 1)
    return jnp.sum(jnp.sum(t, axis=-1, keepdims=True), axis=-2, keepdims=True)


# ------------------------------ fused kernel -------------------------------

def vat_fused_kernel(xdw_ref, scal_ref, lds_ref, pred_ref, *, xi, eps, ip):
    """Entire VATLoss.forward in one kernel.
      xdw_ref  : (2B+1, ROWS, LANE) VMEM  rows [x (B) | d0 (B) | Wcls (1)]
      scal_ref : (C+2,) SMEM              [wseg(0..C-1), bcls, bseg]
      lds_ref  : (1, 1, LANE) VMEM        VAT loss, lane-broadcast (take [0,0,0])
      pred_ref : (B, SEG_ROWS, LANE) VMEM segmentation logits (computed once)
    """
    x = xdw_ref[0:B]                      # (B, ROWS, LANE)
    d0 = xdw_ref[B:2 * B]                 # (B, ROWS, LANE)
    w = xdw_ref[2 * B:2 * B + 1]          # (1, ROWS, LANE)

    # ---- the ONLY vector reductions: issue back-to-back (independent XLU ops) ----
    xw = _psum(x * w)                     # (B,1,1)  <x, Wcls>
    d0w = _psum(d0 * w)                   # (B,1,1)  <d0, Wcls>
    d0sq = _psum(d0 * d0)                 # (B,1,1)  ||d0||^2
    wsq = _psum(w * w)                    # (1,1,1)  ||Wcls||^2

    # ---- segmentation head, computed ONCE (VATLoss discards it) ----
    # Rows [2c, 2c+1] of the (ROWS, LANE) layout hold channel c; x is VMEM-resident,
    # so per-channel vlds are cheap (avoids sublane-strided value extracts).
    seg = xdw_ref[0:B, 0:SEG_ROWS, :] * scal_ref[0]
    for c in range(1, C):
        seg = seg + xdw_ref[0:B, c * SEG_ROWS:(c + 1) * SEG_ROWS, :] * scal_ref[c]
    pred_ref[...] = seg + scal_ref[C + 1]                      # + bseg

    # ---- everything below is scalar math on (B,1,1)/(1,1,1) values ----
    bcls = scal_ref[C]
    p = xw + bcls                              # model(x) classifier logits
    w_nrm = jnp.sqrt(wsq)                      # ||Wcls||  (hoisted out of the loop)
    dw = d0w / (jnp.sqrt(d0sq) + 1e-8)         # <d, w> with d = _l2_normalize(d0)

    sp = jax.nn.sigmoid(p)                     # reused by the VJP and the final KL
    lsp = _log_sigmoid(p)
    inv_b = 1.0 / B

    # ---- power iteration (ip is a static Python int; default 1) ----
    for _ in range(ip):
        q = p + xi * dw                        # cls_head(x + xi*d), by linearity
        # analytic dKL/dq: sigmoid(-p)sigmoid(q) - sigmoid(p)sigmoid(-q) == sq - sp
        gq = (jax.nn.sigmoid(q) - sp) * inv_b  # (B,1,1)
        s = xi * gq                            # grad wrt d is s * Wcls
        scale = s / (jnp.abs(s) * w_nrm + 1e-8)  # fused grad + l2-normalize
        dw = scale * wsq                       # <d_new, w>, d_new = scale * Wcls

    # ---- r_adv = eps*d ; lds = _kl_div(model(x + r_adv), p) ----
    delta = eps * dw                           # q - p, computed directly (no cancel)
    q = p + delta
    # klda + kldb == (logsig(p) - logsig(q)) + (1 - sigmoid(p)) * (q - p)
    kl = (lsp - _log_sigmoid(q)) + (1.0 - sp) * delta          # (B,1,1)
    lds = jnp.sum(kl, axis=0, keepdims=True) * inv_b           # (1,1,1)
    lds_ref[...] = jnp.broadcast_to(lds, (1, 1, LANE))         # lane-dense store


# -------------------------------- wrapper -----------------------------------

@functools.partial(jax.jit, static_argnames=("xi", "eps", "ip"))
def vat_loss(x, d_init, wcls, wseg, bias, xi=XI, eps=EPS, ip=IP):
    """VATLoss.forward(model, x) with the synthetic model baked in.
    Returns (lds, pred): lds is the module output; pred (first-pass segmentation
    head) is exposed only for validation — VATLoss itself discards it."""
    # Pack the three vector operands into one VMEM slab (1 DMA instead of 3).
    xdw = jnp.concatenate(
        [x.reshape(B, ROWS, LANE),             # row-major flatten == torch .view(B,-1)
         d_init.reshape(B, ROWS, LANE),
         wcls.reshape(1, ROWS, LANE)], axis=0).astype(jnp.float32)
    scal = jnp.concatenate([wseg, bias]).astype(jnp.float32)   # (C+2,) SMEM scalars

    lds3, pred3 = pl.pallas_call(
        functools.partial(vat_fused_kernel, xi=float(xi), eps=float(eps), ip=int(ip)),
        out_shape=(jax.ShapeDtypeStruct((1, 1, LANE), jnp.float32),
                   jax.ShapeDtypeStruct((B, SEG_ROWS, LANE), jnp.float32)),
        in_specs=[pl.BlockSpec(memory_space=pltpu.MemorySpace.VMEM),
                  pl.BlockSpec(memory_space=pltpu.MemorySpace.SMEM)],
        out_specs=(pl.BlockSpec(memory_space=pltpu.MemorySpace.VMEM),
                   pl.BlockSpec(memory_space=pltpu.MemorySpace.VMEM)),
    )(xdw, scal)

    lds = lds3[0, 0, 0]
    pred = pred3.reshape(B, 1, H, W)
    return lds, pred


# --------------------------- pure-JAX reference -----------------------------

def _ref_vat_loss(x, d0, wcls, wseg, bias, xi=XI, eps=EPS, ip=IP):
    wrow = wcls.reshape(1, N)

    def model_empty(xin):
        return jnp.sum(xin.reshape(B, N) * wrow, axis=1, keepdims=True) + bias[0]

    def kl(q, p):
        klda = jax.nn.sigmoid(p) * (_log_sigmoid(p) - _log_sigmoid(q))
        kldb = jax.nn.sigmoid(-p) * (_log_sigmoid(-p) - _log_sigmoid(-q))
        return jnp.mean(klda) + jnp.mean(kldb)

    def l2n(d):
        nrm = jnp.sqrt(jnp.sum(d.reshape(B, -1) ** 2, axis=1)).reshape(B, 1, 1, 1)
        return d / (nrm + 1e-8)

    p = model_empty(x)
    d = l2n(d0)
    for _ in range(ip):
        g = jax.grad(lambda dd: kl(model_empty(x + xi * dd), p))(d)
        d = l2n(g)
    return kl(model_empty(x + eps * d), p)


if __name__ == "__main__":
    key = jax.random.PRNGKey(0)
    kx, kd, kw1, kw2 = jax.random.split(key, 4)

    x = 0.25 * jax.random.normal(kx, (B, C, H, W), dtype=jnp.float32)
    # torch.rand(x.shape).sub(0.5) -> uniform in [-0.5, 0.5)
    d0 = jax.random.uniform(kd, (B, C, H, W), dtype=jnp.float32,
                            minval=-0.5, maxval=0.5)
    # deterministic synthetic "model" parameters
    wcls = 0.05 * jax.random.normal(kw1, (N, 1), dtype=jnp.float32)   # classifier head
    wseg = 0.10 * jax.random.normal(kw2, (C,), dtype=jnp.float32)     # 1x1-conv head
    bias = jnp.array([0.1, -0.2], dtype=jnp.float32)                  # [bcls, bseg]

    lds, pred = vat_loss(x, d0, wcls, wseg, bias)
    lds = jax.block_until_ready(lds)

    # sanity-check the (loss-irrelevant) segmentation head, computed once in-kernel
    pred_expect = jnp.einsum('bchw,c->bhw', x, wseg)[:, None, :, :] + bias[1]
    assert jnp.allclose(pred, pred_expect, atol=1e-5, rtol=1e-5)

    lds_ref = jax.block_until_ready(_ref_vat_loss(x, d0, wcls, wseg, bias))
    a, b = float(lds), float(lds_ref)
    # The kernel computes q-p = xi*<d,w> directly (no cancellation), but the pure-JAX
    # reference still differences two independently-reduced 1024-element f32 sums
    # inside its autodiff, so the scale factor near the 1e-8 epsilon carries %-level
    # noise in the *reference*; keep a loose cross-implementation tolerance.
    assert abs(a - b) <= 1e-5 + 5e-2 * abs(b), (a, b)

    print("KERNEL_OK")
</pallas_src>

<mosaic_0001>
module attributes {stable_mosaic.version = 11 : i64} {
  func.func @vat_fused_kernel(%arg0: memref<5x8x128xf32, #tpu.memory_space<vmem>>, %arg1: memref<6xf32, #tpu.memory_space<smem>>, %arg2: memref<1x1x128xf32, #tpu.memory_space<vmem>>, %arg3: memref<2x2x128xf32, #tpu.memory_space<vmem>>) attributes {dimension_semantics = [], scalar_prefetch = 0 : i64, scratch_operands = 0 : i64, tpu.core_type = #tpu.core_type<tc>} {
    %c0 = arith.constant 0 : index
    %c0_0 = arith.constant 0 : index
    %c0_1 = arith.constant 0 : index
    %0 = vector.load %arg0[%c0, %c0_0, %c0_1] : memref<5x8x128xf32, #tpu.memory_space<vmem>>, vector<2x8x128xf32>
    %c2 = arith.constant 2 : index
    %c0_2 = arith.constant 0 : index
    %c0_3 = arith.constant 0 : index
    %1 = vector.load %arg0[%c2, %c0_2, %c0_3] : memref<5x8x128xf32, #tpu.memory_space<vmem>>, vector<2x8x128xf32>
    %c4 = arith.constant 4 : index
    %c0_4 = arith.constant 0 : index
    %c0_5 = arith.constant 0 : index
    %2 = vector.load %arg0[%c4, %c0_4, %c0_5] : memref<5x8x128xf32, #tpu.memory_space<vmem>>, vector<1x8x128xf32>
    %3 = vector.broadcast %2 : vector<1x8x128xf32> to vector<2x8x128xf32>
    %4 = arith.mulf %0, %3 : vector<2x8x128xf32>
    %cst = arith.constant dense<0.000000e+00> : vector<2x8xf32>
    %5 = vector.multi_reduction <add>, %4, %cst [2] : vector<2x8x128xf32> to vector<2x8xf32>
    %6 = vector.shape_cast %5 : vector<2x8xf32> to vector<2x8x1xf32>
    %cst_6 = arith.constant dense<0.000000e+00> : vector<2x1xf32>
    %7 = vector.multi_reduction <add>, %6, %cst_6 [1] : vector<2x8x1xf32> to vector<2x1xf32>
    %8 = vector.shape_cast %7 : vector<2x1xf32> to vector<2x1x1xf32>
    %9 = vector.broadcast %2 : vector<1x8x128xf32> to vector<2x8x128xf32>
    %10 = arith.mulf %1, %9 : vector<2x8x128xf32>
    %cst_7 = arith.constant dense<0.000000e+00> : vector<2x8xf32>
    %11 = vector.multi_reduction <add>, %10, %cst_7 [2] : vector<2x8x128xf32> to vector<2x8xf32>
    %12 = vector.shape_cast %11 : vector<2x8xf32> to vector<2x8x1xf32>
    %cst_8 = arith.constant dense<0.000000e+00> : vector<2x1xf32>
    %13 = vector.multi_reduction <add>, %12, %cst_8 [1] : vector<2x8x1xf32> to vector<2x1xf32>
    %14 = vector.shape_cast %13 : vector<2x1xf32> to vector<2x1x1xf32>
    %15 = arith.mulf %1, %1 : vector<2x8x128xf32>
    %cst_9 = arith.constant dense<0.000000e+00> : vector<2x8xf32>
    %16 = vector.multi_reduction <add>, %15, %cst_9 [2] : vector<2x8x128xf32> to vector<2x8xf32>
    %17 = vector.shape_cast %16 : vector<2x8xf32> to vector<2x8x1xf32>
    %cst_10 = arith.constant dense<0.000000e+00> : vector<2x1xf32>
    %18 = vector.multi_reduction <add>, %17, %cst_10 [1] : vector<2x8x1xf32> to vector<2x1xf32>
    %19 = vector.shape_cast %18 : vector<2x1xf32> to vector<2x1x1xf32>
    %20 = arith.mulf %2, %2 : vector<1x8x128xf32>
    %cst_11 = arith.constant dense<0.000000e+00> : vector<1x8xf32>
    %21 = vector.multi_reduction <add>, %20, %cst_11 [2] : vector<1x8x128xf32> to vector<1x8xf32>
    %22 = vector.shape_cast %21 : vector<1x8xf32> to vector<1x8x1xf32>
    %cst_12 = arith.constant dense<0.000000e+00> : vector<1x1xf32>
    %23 = vector.multi_reduction <add>, %22, %cst_12 [1] : vector<1x8x1xf32> to vector<1x1xf32>
    %24 = vector.shape_cast %23 : vector<1x1xf32> to vector<1x1x1xf32>
    %c0_13 = arith.constant 0 : index
    %c0_14 = arith.constant 0 : index
    %c0_15 = arith.constant 0 : index
    %25 = vector.load %arg0[%c0_13, %c0_14, %c0_15] : memref<5x8x128xf32, #tpu.memory_space<vmem>>, vector<2x2x128xf32>
    %c0_16 = arith.constant 0 : index
    %26 = memref.load %arg1[%c0_16] : memref<6xf32, #tpu.memory_space<smem>>
    %27 = vector.broadcast %26 : f32 to vector<2x2x128xf32>
    %28 = arith.mulf %25, %27 : vector<2x2x128xf32>
    %c0_17 = arith.constant 0 : index
    %c2_18 = arith.constant 2 : index
    %c0_19 = arith.constant 0 : index
    %29 = vector.load %arg0[%c0_17, %c2_18, %c0_19] : memref<5x8x128xf32, #tpu.memory_space<vmem>>, vector<2x2x128xf32>
    %c1 = arith.constant 1 : index
    %30 = memref.load %arg1[%c1] : memref<6xf32, #tpu.memory_space<smem>>
    %31 = vector.broadcast %30 : f32 to vector<2x2x128xf32>
    %32 = arith.mulf %29, %31 : vector<2x2x128xf32>
    %33 = arith.addf %28, %32 : vector<2x2x128xf32>
    %c0_20 = arith.constant 0 : index
    %c4_21 = arith.constant 4 : index
    %c0_22 = arith.constant 0 : index
    %34 = vector.load %arg0[%c0_20, %c4_21, %c0_22] : memref<5x8x128xf32, #tpu.memory_space<vmem>>, vector<2x2x128xf32>
    %c2_23 = arith.constant 2 : index
    %35 = memref.load %arg1[%c2_23] : memref<6xf32, #tpu.memory_space<smem>>
    %36 = vector.broadcast %35 : f32 to vector<2x2x128xf32>
    %37 = arith.mulf %34, %36 : vector<2x2x128xf32>
    %38 = arith.addf %33, %37 : vector<2x2x128xf32>
    %c0_24 = arith.constant 0 : index
    %c6 = arith.constant 6 : index
    %c0_25 = arith.constant 0 : index
    %39 = vector.load %arg0[%c0_24, %c6, %c0_25] : memref<5x8x128xf32, #tpu.memory_space<vmem>>, vector<2x2x128xf32>
    %c3 = arith.constant 3 : index
    %40 = memref.load %arg1[%c3] : memref<6xf32, #tpu.memory_space<smem>>
    %41 = vector.broadcast %40 : f32 to vector<2x2x128xf32>
    %42 = arith.mulf %39, %41 : vector<2x2x128xf32>
    %43 = arith.addf %38, %42 : vector<2x2x128xf32>
    %c5 = arith.constant 5 : index
    %44 = memref.load %arg1[%c5] : memref<6xf32, #tpu.memory_space<smem>>
    %45 = vector.broadcast %44 : f32 to vector<2x2x128xf32>
    %46 = arith.addf %43, %45 : vector<2x2x128xf32>
    %c0_26 = arith.constant 0 : index
    %c0_27 = arith.constant 0 : index
    %c0_28 = arith.constant 0 : index
    %47 = vector.load %arg3[%c0_26, %c0_27, %c0_28] : memref<2x2x128xf32, #tpu.memory_space<vmem>>, vector<2x2x128xf32>
    tpu.vector_store %arg3[%c0_26, %c0_27, %c0_28], %46 {strides = array<i32>} : memref<2x2x128xf32, #tpu.memory_space<vmem>>, vector<2x2x128xf32>,
    %c4_29 = arith.constant 4 : index
    %48 = memref.load %arg1[%c4_29] : memref<6xf32, #tpu.memory_space<smem>>
    %49 = vector.broadcast %48 : f32 to vector<2x1x1xf32>
    %50 = arith.addf %8, %49 : vector<2x1x1xf32>
    %51 = math.sqrt %24 : vector<1x1x1xf32>
    %52 = math.sqrt %19 : vector<2x1x1xf32>
    %cst_30 = arith.constant 9.99999993E-9 : f32
    %53 = vector.broadcast %cst_30 : f32 to vector<2x1x1xf32>
    %54 = arith.addf %52, %53 : vector<2x1x1xf32>
    %55 = arith.divf %14, %54 : vector<2x1x1xf32>
    %56 = arith.negf %50 : vector<2x1x1xf32>
    %57 = math.exp %56 : vector<2x1x1xf32>
    %cst_31 = arith.constant 1.000000e+00 : f32
    %58 = vector.broadcast %cst_31 : f32 to vector<2x1x1xf32>
    %59 = arith.addf %58, %57 : vector<2x1x1xf32>
    %60 = arith.divf %58, %59 : vector<2x1x1xf32>
    %cst_32 = arith.constant 0.000000e+00 : f32
    %61 = vector.broadcast %cst_32 : f32 to vector<2x1x1xf32>
    %62 = arith.minimumf %50, %61 : vector<2x1x1xf32>
    %63 = math.absf %50 : vector<2x1x1xf32>
    %cst_33 = arith.constant 0.000000e+00 : f32
    %64 = vector.broadcast %cst_33 : f32 to vector<2x1x1xf32>
    %65 = arith.subf %64, %63 : vector<2x1x1xf32>
    %66 = math.exp %65 : vector<2x1x1xf32>
    %67 = math.log1p %66 : vector<2x1x1xf32>
    %68 = arith.subf %62, %67 : vector<2x1x1xf32>
    %cst_34 = arith.constant 1.000000e-03 : f32
    %69 = vector.broadcast %cst_34 : f32 to vector<2x1x1xf32>
    %70 = arith.mulf %69, %55 : vector<2x1x1xf32>
    %71 = arith.addf %50, %70 : vector<2x1x1xf32>
    %72 = arith.negf %71 : vector<2x1x1xf32>
    %73 = math.exp %72 : vector<2x1x1xf32>
    %cst_35 = arith.constant 1.000000e+00 : f32
    %74 = vector.broadcast %cst_35 : f32 to vector<2x1x1xf32>
    %75 = arith.addf %74, %73 : vector<2x1x1xf32>
    %76 = arith.divf %74, %75 : vector<2x1x1xf32>
    %77 = arith.subf %76, %60 : vector<2x1x1xf32>
    %cst_36 = arith.constant 5.000000e-01 : f32
    %78 = vector.broadcast %cst_36 : f32 to vector<2x1x1xf32>
    %79 = arith.mulf %77, %78 : vector<2x1x1xf32>
    %cst_37 = arith.constant 1.000000e-03 : f32
    %80 = vector.broadcast %cst_37 : f32 to vector<2x1x1xf32>
    %81 = arith.mulf %80, %79 : vector<2x1x1xf32>
    %82 = math.absf %81 : vector<2x1x1xf32>
    %83 = vector.broadcast %51 : vector<1x1x1xf32> to vector<2x1x1xf32>
    %84 = arith.mulf %82, %83 : vector<2x1x1xf32>
    %cst_38 = arith.constant 9.99999993E-9 : f32
    %85 = vector.broadcast %cst_38 : f32 to vector<2x1x1xf32>
    %86 = arith.addf %84, %85 : vector<2x1x1xf32>
    %87 = arith.divf %81, %86 : vector<2x1x1xf32>
    %88 = vector.broadcast %24 : vector<1x1x1xf32> to vector<2x1x1xf32>
    %89 = arith.mulf %87, %88 : vector<2x1x1xf32>
    %cst_39 = arith.constant 1.000000e+00 : f32
    %90 = vector.broadcast %cst_39 : f32 to vector<2x1x1xf32>
    %91 = arith.mulf %90, %89 : vector<2x1x1xf32>
    %92 = arith.addf %50, %91 : vector<2x1x1xf32>
    %cst_40 = arith.constant 0.000000e+00 : f32
    %93 = vector.broadcast %cst_40 : f32 to vector<2x1x1xf32>
    %94 = arith.minimumf %92, %93 : vector<2x1x1xf32>
    %95 = math.absf %92 : vector<2x1x1xf32>
    %cst_41 = arith.constant 0.000000e+00 : f32
    %96 = vector.broadcast %cst_41 : f32 to vector<2x1x1xf32>
    %97 = arith.subf %96, %95 : vector<2x1x1xf32>
    %98 = math.exp %97 : vector<2x1x1xf32>
    %99 = math.log1p %98 : vector<2x1x1xf32>
    %100 = arith.subf %94, %99 : vector<2x1x1xf32>
    %101 = arith.subf %68, %100 : vector<2x1x1xf32>
    %cst_42 = arith.constant 1.000000e+00 : f32
    %102 = vector.broadcast %cst_42 : f32 to vector<2x1x1xf32>
    %103 = arith.subf %102, %60 : vector<2x1x1xf32>
    %104 = arith.mulf %103, %91 : vector<2x1x1xf32>
    %105 = arith.addf %101, %104 : vector<2x1x1xf32>
    %cst_43 = arith.constant dense<0.000000e+00> : vector<1x1xf32>
    %106 = vector.multi_reduction <add>, %105, %cst_43 [0] : vector<2x1x1xf32> to vector<1x1xf32>
    %107 = vector.shape_cast %106 : vector<1x1xf32> to vector<1x1x1xf32>
    %cst_44 = arith.constant 5.000000e-01 : f32
    %108 = vector.broadcast %cst_44 : f32 to vector<1x1x1xf32>
    %109 = arith.mulf %107, %108 : vector<1x1x1xf32>
    %110 = vector.shape_cast %109 : vector<1x1x1xf32> to vector<1x1x1xf32>
    %111 = vector.broadcast %110 : vector<1x1x1xf32> to vector<1x1x128xf32>
    %c0_45 = arith.constant 0 : index
    %c0_46 = arith.constant 0 : index
    %c0_47 = arith.constant 0 : index
    %112 = vector.load %arg2[%c0_45, %c0_46, %c0_47] : memref<1x1x128xf32, #tpu.memory_space<vmem>>, vector<1x1x128xf32>
    tpu.vector_store %arg2[%c0_45, %c0_46, %c0_47], %111 {strides = array<i32>} : memref<1x1x128xf32, #tpu.memory_space<vmem>>, vector<1x1x128xf32>,
    return
  }
}

</mosaic_0001>

<llo_original>
// kernel: vat_loss.1
$region0: #{vat_loss.1}
  #allocation0 [shape = 'u32[]', space=smem, size = 0x4, offset = 0x4, fixed_abs, tag = 'smem constant byte address 0x4 - core index']
  #allocation1 [shape = 'u32[144,128]{1,0:T(1,128)}', space=vmem, size = 0x12000, scoped, tag = 'internal scratch']
  %s0 = inlined_call_operand.vmem [shape: f32[5,8,128], index: 0, kind: input, shape index: {}]
  %s1 = inlined_call_operand.vmem [shape: f32[6], index: 1, kind: input, shape index: {}]
  %s2 = inlined_call_operand.hbm [shape: f32[1,1,128], index: 2, kind: output, shape index: {0}]
  %s3 = inlined_call_operand.vmem [shape: f32[2,2,128], index: 3, kind: output, shape index: {1}]
  %4 = xla_tuple %s2, %s3
  %s5 = sld [smem:[#allocation0]]
  $region30: #{vat_loss.1} parent=0
    _
  %s7 = ssub.s32 1, %s5
  %s8 = scalar_select 0, %s7, %s5
  $region1: #{vat_loss.1} parent=0
    #allocation2 [shape = 'u8[512]{0}', space=smem, size = 0x200, scoped, tag = 'input window, operand 1, single buffered']
    #allocation3 [shape = 's32[1]{0}', space=sflag, size = 0x4, scoped, tag = 'scoped memory for vat_loss.1']
    #allocation4 [shape = 's32[1]{0}', space=sflag, size = 0x4, scoped, tag = 'scoped memory for vat_loss.1']
    #allocation5 [shape = 'u8[512]{0}', space=vmem, size = 0x400, scoped, tag = 'output window, operand 0, single buffered']
    %9 = vsyncpa [#allocation4], 0
    %10 = vsyncpa [#allocation3], 0
    // Predicated region
    $region2: #{vat_loss.1} parent=1 // pred_check
      _
    $region3: #{vat_loss.1} parent=1 // pred_check_branch
      %12 = sbr.rel (0) target = $region5
    $region4: #{vat_loss.1} parent=1 // pred_region
      _
    $region5: #{vat_loss.1} parent=1 // pred_fallthru
      _
    // Predicated region
    $region6: #{vat_loss.1} parent=1 // pred_check
      _
    $region7: #{vat_loss.1} parent=1 // pred_check_branch
      %14 = sbr.rel (0) target = $region9
    $region8: #{vat_loss.1} parent=1 // pred_region
      %s16 = ssub.s32 16, 16
      %17 = vsyncadd [#allocation4], %s16
      %s19 = sshll.u32 %s1, 4
      %s20 = int_to_ptr.vmem [resolvable:$true] %s19
      %22 = dma.vmem_to_smem %s20, 16, [#allocation2], [#allocation4]
    $region9: #{vat_loss.1} parent=1 // pred_fallthru
      _
    // Predicated region
    $region10: #{vat_loss.1} parent=1 // pred_check
      _
    $region11: #{vat_loss.1} parent=1 // pred_check_branch
      %24 = sbr.rel (0) target = $region13
    $region12: #{vat_loss.1} parent=1 // pred_region
      %25 = dma.done [#allocation4], 16
    $region13: #{vat_loss.1} parent=1 // pred_fallthru
      _
    %26 = sfence
    %v27 = vld [vmem:[%s0] sm:$0xff]
    %v28 = vld [vmem:[%s0 + $0x8] sm:$0xff]
    %s29 = scalar_lea.vmem %s0, 16
    %v30 = vld [vmem:[%s29] sm:$0xff]
    %v31 = vld [vmem:[%s29 + $0x8] sm:$0xff]
    %s32 = scalar_lea.vmem %s0, 32
    %v33 = vld [vmem:[%s32] sm:$0xff]
    %v34 = vmul.f32 %v27, %v33
    %v35 = vmul.f32 %v28, %v33
    %36 = vadd.xlane.f32.xlu0 %v34
    %v37 = vpop.xlane.xlu0 %36
    %38 = vadd.xlane.f32.xlu0 %v35
    %v39 = vpop.xlane.xlu0 %38
    %v40 = vrot.slane %v37, 4
    %v41 = vadd.f32 %v37, %v40
    %v42 = vrot.slane %v41, 2
    %v43 = vadd.f32 %v41, %v42
    %v44 = vrot.slane %v43, 1
    %v45 = vadd.f32 %v43, %v44
    %v46 = vrot.slane %v39, 4
    %v47 = vadd.f32 %v39, %v46
    %v48 = vrot.slane %v47, 2
    %v49 = vadd.f32 %v47, %v48
    %v50 = vrot.slane %v49, 1
    %v51 = vadd.f32 %v49, %v50
    %v52 = vmul.f32 %v30, %v33
    %v53 = vmul.f32 %v31, %v33
    %54 = vadd.xlane.f32.xlu0 %v52
    %v55 = vpop.xlane.xlu0 %54
    %56 = vadd.xlane.f32.xlu0 %v53
    %v57 = vpop.xlane.xlu0 %56
    %v58 = vrot.slane %v55, 4
    %v59 = vadd.f32 %v55, %v58
    %v60 = vrot.slane %v59, 2
    %v61 = vadd.f32 %v59, %v60
    %v62 = vrot.slane %v61, 1
    %v63 = vadd.f32 %v61, %v62
    %v64 = vrot.slane %v57, 4
    %v65 = vadd.f32 %v57, %v64
    %v66 = vrot.slane %v65, 2
    %v67 = vadd.f32 %v65, %v66
    %v68 = vrot.slane %v67, 1
    %v69 = vadd.f32 %v67, %v68
    %v70 = vmul.f32 %v30, %v30
    %v71 = vmul.f32 %v31, %v31
    %72 = vadd.xlane.f32.xlu0 %v70
    %v73 = vpop.xlane.xlu0 %72
    %74 = vadd.xlane.f32.xlu0 %v71
    %v75 = vpop.xlane.xlu0 %74
    %v76 = vrot.slane %v73, 4
    %v77 = vadd.f32 %v73, %v76
    %v78 = vrot.slane %v77, 2
    %v79 = vadd.f32 %v77, %v78
    %v80 = vrot.slane %v79, 1
    %v81 = vadd.f32 %v79, %v80
    %v82 = vrot.slane %v75, 4
    %v83 = vadd.f32 %v75, %v82
    %v84 = vrot.slane %v83, 2
    %v85 = vadd.f32 %v83, %v84
    %v86 = vrot.slane %v85, 1
    %v87 = vadd.f32 %v85, %v86
    %v88 = vmul.f32 %v33, %v33
    %89 = vadd.xlane.f32.xlu0 %v88
    %v90 = vpop.xlane.xlu0 %89
    %v91 = vrot.slane %v90, 4
    %v92 = vadd.f32 %v90, %v91
    %v93 = vrot.slane %v92, 2
    %v94 = vadd.f32 %v92, %v93
    %v95 = vrot.slane %v94, 1
    %v96 = vadd.f32 %v94, %v95
    %v97 = vld [vmem:[%s0] sm:$0x3]
    %v98 = vld [vmem:[%s0 + $0x8] sm:$0x3]
    %s99 = sld [smem:[#allocation2]]
    %v100 = vstv %s99
    %v101 = vmul.f32 %v97, %v100
    %v102 = vmul.f32 %v98, %v100
    %v103 = vld [vmem:[%s0 + $0x2] sm:$0x3]
    %v104 = vld [vmem:[%s0 + $0xa] sm:$0x3]
    %s105 = sld [smem:[#allocation2 + $0x1]]
    %v106 = vstv %s105
    %v107 = vmul.f32 %v103, %v106
    %v108 = vmul.f32 %v104, %v106
    %v109 = vadd.f32 %v101, %v107
    %v110 = vadd.f32 %v102, %v108
    %v111 = vld [vmem:[%s0 + $0x4] sm:$0x3]
    %v112 = vld [vmem:[%s0 + $0xc] sm:$0x3]
    %s113 = sld [smem:[#allocation2 + $0x2]]
    %v114 = vstv %s113
    %v115 = vmul.f32 %v111, %v114
    %v116 = vmul.f32 %v112, %v114
    %v117 = vadd.f32 %v109, %v115
    %v118 = vadd.f32 %v110, %v116
    %v119 = vld [vmem:[%s0 + $0x6] sm:$0x3]
    %v120 = vld [vmem:[%s0 + $0xe] sm:$0x3]
    %s121 = sld [smem:[#allocation2 + $0x3]]
    %v122 = vstv %s121
    %v123 = vmul.f32 %v119, %v122
    %v124 = vmul.f32 %v120, %v122
    %v125 = vadd.f32 %v117, %v123
    %v126 = vadd.f32 %v118, %v124
    %s127 = sld [smem:[#allocation2 + $0x5]]
    %v128 = vstv %s127
    %v129 = vadd.f32 %v125, %v128
    %v130 = vadd.f32 %v126, %v128
    %131 = vst [vmem:[%s3] sm:$0x3] %v129
    %132 = vst [vmem:[%s3 + $0x2] sm:$0x3] %v130
    %s133 = sld [smem:[#allocation2 + $0x4]]
    %v134 = vstv %s133
    %v135 = vadd.f32 %v45, %v134
    %v136 = vadd.f32 %v51, %v134
    %v137 = vrsqrt.pop %v96
    %v138 = vmul.f32 %v96, %v137
    %vm139 = vcmp.eq.f32.partialorder %v96, inf
    %v140 = vsel %vm139, %v96, %v138
    %vm141 = vcmp.eq.f32.partialorder %v96, 0.0
    %v142 = vand.u32 %v96, 2147483648
    %v143 = vsel %vm141, %v142, %v140
    %v144 = vrsqrt.pop %v81
    %v145 = vmul.f32 %v81, %v144
    %vm146 = vcmp.eq.f32.partialorder %v81, inf
    %v147 = vsel %vm146, %v81, %v145
    %vm148 = vcmp.eq.f32.partialorder %v81, 0.0
    %v149 = vand.u32 %v81, 2147483648
    %v150 = vsel %vm148, %v149, %v147
    %v151 = vrsqrt.pop %v87
    %v152 = vmul.f32 %v87, %v151
    %vm153 = vcmp.eq.f32.partialorder %v87, inf
    %v154 = vsel %vm153, %v87, %v152
    %vm155 = vcmp.eq.f32.partialorder %v87, 0.0
    %v156 = vand.u32 %v87, 2147483648
    %v157 = vsel %vm155, %v156, %v154
    %v158 = vadd.f32 %v150, 1e-08
    %v159 = vadd.f32 %v157, 1e-08
    %v160 = vrcp.pop %v158
    %v161 = vmul.f32 %v63, %v160
    %v162 = vrcp.pop %v159
    %v163 = vmul.f32 %v69, %v162
    %v164 = vxor.u32 %v135, 2147483648
    %v165 = vxor.u32 %v136, 2147483648
    %v166 = vmul.f32 %v164, 1.442695
    %v167 = vpow.pop %v166
    %v168 = vmul.f32 %v165, 1.442695
    %v169 = vpow.pop %v168
    %v170 = vadd.f32 %v167, 1.0
    %v171 = vadd.f32 %v169, 1.0
    %v172 = vrcp.pop %v170
    %v173 = vmul.f32 1.0, %v172
    %v174 = vrcp.pop %v171
    %v175 = vmul.f32 1.0, %v174
    %v176 = vmin.f32 %v135, 0.0
    %v177 = vmin.f32 %v136, 0.0
    %v178 = vand.u32 2147483647, %v135
    %v179 = vand.u32 2147483647, %v136
    %v180 = vsub.f32 0.0, %v178
    %v181 = vsub.f32 0.0, %v179
    %v182 = vmul.f32 %v180, 1.442695
    %v183 = vpow.pop %v182
    %v184 = vmul.f32 %v181, 1.442695
    %v185 = vpow.pop %v184
    %v186 = vadd.f32 %v183, 1.0
    %v187 = vlog2.pop %v186
    %v188 = vmul.f32 %v187, 0.6931472
    %v189 = vmul.f32 -0.5, %v183
    %v190 = vadd.f32 %v189, 1.0
    %v191 = vmul.f32 %v190, %v183
    %v192 = vand.u32 2147483647, %v183
    %vm193 = vcmp.lt.f32.partialorder %v192, 0.0004427343
    %v194 = vsel %vm193, %v191, %v188
    %v195 = vadd.f32 %v185, 1.0
    %v196 = vlog2.pop %v195
    %v197 = vmul.f32 %v196, 0.6931472
    %v198 = vmul.f32 -0.5, %v185
    %v199 = vadd.f32 %v198, 1.0
    %v200 = vmul.f32 %v199, %v185
    %v201 = vand.u32 2147483647, %v185
    %vm202 = vcmp.lt.f32.partialorder %v201, 0.0004427343
    %v203 = vsel %vm202, %v200, %v197
    %v204 = vsub.f32 %v176, %v194
    %v205 = vsub.f32 %v177, %v203
    %v206 = vmul.f32 %v161, 0.001
    %v207 = vmul.f32 %v163, 0.001
    %v208 = vadd.f32 %v135, %v206
    %v209 = vadd.f32 %v136, %v207
    %v210 = vxor.u32 %v208, 2147483648
    %v211 = vxor.u32 %v209, 2147483648
    %v212 = vmul.f32 %v210, 1.442695
    %v213 = vpow.pop %v212
    %v214 = vmul.f32 %v211, 1.442695
    %v215 = vpow.pop %v214
    %v216 = vadd.f32 %v213, 1.0
    %v217 = vadd.f32 %v215, 1.0
    %v218 = vrcp.pop %v216
    %v219 = vmul.f32 1.0, %v218
    %v220 = vrcp.pop %v217
    %v221 = vmul.f32 1.0, %v220
    %v222 = vsub.f32 %v219, %v173
    %v223 = vsub.f32 %v221, %v175
    %v224 = vmul.f32 %v222, 0.5
    %v225 = vmul.f32 %v223, 0.5
    %v226 = vmul.f32 %v224, 0.001
    %v227 = vmul.f32 %v225, 0.001
    %v228 = vand.u32 2147483647, %v226
    %v229 = vand.u32 2147483647, %v227
    %v230 = vmul.f32 %v228, %v143
    %v231 = vmul.f32 %v229, %v143
    %v232 = vadd.f32 %v230, 1e-08
    %v233 = vadd.f32 %v231, 1e-08
    %v234 = vrcp.pop %v232
    %v235 = vmul.f32 %v226, %v234
    %v236 = vrcp.pop %v233
    %v237 = vmul.f32 %v227, %v236
    %v238 = vmul.f32 %v235, %v96
    %v239 = vmul.f32 %v237, %v96
    %v240 = vadd.f32 %v135, %v238
    %v241 = vadd.f32 %v136, %v239
    %v242 = vmin.f32 %v240, 0.0
    %v243 = vmin.f32 %v241, 0.0
    %v244 = vand.u32 2147483647, %v240
    %v245 = vand.u32 2147483647, %v241
    %v246 = vsub.f32 0.0, %v244
    %v247 = vsub.f32 0.0, %v245
    %v248 = vmul.f32 %v246, 1.442695
    %v249 = vpow.pop %v248
    %v250 = vmul.f32 %v247, 1.442695
    %v251 = vpow.pop %v250
    %v252 = vadd.f32 %v249, 1.0
    %v253 = vlog2.pop %v252
    %v254 = vmul.f32 %v253, 0.6931472
    %v255 = vmul.f32 -0.5, %v249
    %v256 = vadd.f32 %v255, 1.0
    %v257 = vmul.f32 %v256, %v249
    %v258 = vand.u32 2147483647, %v249
    %vm259 = vcmp.lt.f32.partialorder %v258, 0.0004427343
    %v260 = vsel %vm259, %v257, %v254
    %v261 = vadd.f32 %v251, 1.0
    %v262 = vlog2.pop %v261
    %v263 = vmul.f32 %v262, 0.6931472
    %v264 = vmul.f32 -0.5, %v251
    %v265 = vadd.f32 %v264, 1.0
    %v266 = vmul.f32 %v265, %v251
    %v267 = vand.u32 2147483647, %v251
    %vm268 = vcmp.lt.f32.partialorder %v267, 0.0004427343
    %v269 = vsel %vm268, %v266, %v263
    %v270 = vsub.f32 %v242, %v260
    %v271 = vsub.f32 %v243, %v269
    %v272 = vsub.f32 %v204, %v270
    %v273 = vsub.f32 %v205, %v271
    %v274 = vsub.f32 1.0, %v173
    %v275 = vsub.f32 1.0, %v175
    %v276 = vmul.f32 %v274, %v238
    %v277 = vmul.f32 %v275, %v239
    %v278 = vadd.f32 %v272, %v276
    %v279 = vadd.f32 %v273, %v277
    %v280 = vadd.f32 %v278, %v279
    %v281 = vmul.f32 %v280, 0.5
    %282 = vst [vmem:[#allocation5] sm:$0x1] %v281
    // Predicated region
    $region14: #{vat_loss.1} parent=1 // pred_check
      _
    $region15: #{vat_loss.1} parent=1 // pred_check_branch
      %284 = sbr.rel (0) target = $region17
    $region16: #{vat_loss.1} parent=1 // pred_region
      %s286 = ssub.s32 16, 16
      %287 = vsyncadd [#allocation3], %s286
      %s289 = sshll.u32 [#allocation5], 4
      %s290 = int_to_ptr.vmem [resolvable:$true] %s289
      %292 = dma.vmem_to_hbm [thread:$0]  %s290, 16, %s2, [#allocation3]
    $region17: #{vat_loss.1} parent=1 // pred_fallthru
      _
    // Predicated region
    $region18: #{vat_loss.1} parent=1 // pred_check
      _
    $region19: #{vat_loss.1} parent=1 // pred_check_branch
      %294 = sbr.rel (0) target = $region21
    $region20: #{vat_loss.1} parent=1 // pred_region
      _
    $region21: #{vat_loss.1} parent=1 // pred_fallthru
      _
    // Predicated region
    $region22: #{vat_loss.1} parent=1 // pred_check
      _
    $region23: #{vat_loss.1} parent=1 // pred_check_branch
      %296 = sbr.rel (0) target = $region25
    $region24: #{vat_loss.1} parent=1 // pred_region
      %297 = dma.done [#allocation3], 16
    $region25: #{vat_loss.1} parent=1 // pred_fallthru
      _
    // Predicated region
    $region26: #{vat_loss.1} parent=1 // pred_check
      _
    $region27: #{vat_loss.1} parent=1 // pred_check_branch
      %299 = sbr.rel (0) target = $region29
    $region28: #{vat_loss.1} parent=1 // pred_region
      _
    $region29: #{vat_loss.1} parent=1 // pred_fallthru
      _
    %300 = vsyncpa [#allocation3], 1
    %301 = vsyncpa [#allocation4], 1

</llo_original>
